<compile_context>
chip_gen: v7x
topology: tpu7x:2x2x1
jax: 0.10.0
libtpu: 0.0.40
codegen_flags: <defaults>
</compile_context>

<pallas_src>
import jax
import jax.numpy as jnp
from jax.experimental import pallas as pl
from jax.experimental.pallas import tpu as pltpu  # noqa: F401  (kept for TPU-specific params if needed)


def conv1x1_dw_sigmoid_kernel(w_ref, b_ref, x_ref, o_ref):
    # w_ref, b_ref: (N*C, 1) VMEM column vectors (broadcast over lanes)
    # x_ref, o_ref: (N*C, H*W) VMEM tiles (lane-dense last dim)
    y = x_ref[...] * w_ref[...] + b_ref[...]
    denom = 1.0 + jnp.exp(-y)                      # exp on EUP
    o_ref[...] = pl.reciprocal(denom, approx=True)  # reciprocal on EUP (not a VALU divide)


def model_forward(x, weight, bias):
    # x: (N, C, H, W) float32
    # weight: (C, 1, 1, 1) float32 (PyTorch grouped-conv weight shape for groups=C)
    # bias:   (C,) float32
    N, C, H, W = x.shape

    # Lane-dense flatten: rows = (n, c) pairs, columns = flattened spatial (H*W).
    x2 = x.reshape(N * C, H * W)

    # Per-row scale/bias: row index r = n*C + c  ->  channel c = r % C.
    w_rows = jnp.tile(weight.reshape(C).astype(x.dtype), (N,)).reshape(N * C, 1)
    b_rows = jnp.tile(bias.reshape(C).astype(x.dtype), (N,)).reshape(N * C, 1)

    # Single grid point: whole problem in one block (8 KiB f32 -> trivially fits VMEM).
    # Note: at this tiny size a plain fused jnp expression would also be fine; the Pallas
    # kernel is kept per the exercise, structured so it scales (lane-dense, one DMA slab).
    out2 = pl.pallas_call(
        conv1x1_dw_sigmoid_kernel,
        out_shape=jax.ShapeDtypeStruct((N * C, H * W), x.dtype),
    )(w_rows, b_rows, x2)

    return out2.reshape(N, C, H, W)


if __name__ == "__main__":
    key = jax.random.PRNGKey(0)
    kx, kw, kb = jax.random.split(key, 3)

    N, C, H, W = 2, 2, 16, 16  # forward implies C=2 input channels
    x = jax.random.normal(kx, (N, C, H, W), dtype=jnp.float32)

    # Deterministic parameter init (Conv2d(2,2,1,groups=2): weight (2,1,1,1), bias (2,))
    weight = jax.random.normal(kw, (C, 1, 1, 1), dtype=jnp.float32) * 0.5
    bias = jax.random.normal(kb, (C,), dtype=jnp.float32) * 0.1

    out = model_forward(x, weight, bias)
    jax.block_until_ready(out)

    # Reference check in plain JAX (approx EUP reciprocal -> slightly looser tolerance)
    ref = jax.nn.sigmoid(x * weight.reshape(1, C, 1, 1) + bias.reshape(1, C, 1, 1))
    assert jnp.allclose(out, ref, atol=5e-3, rtol=5e-3), "mismatch vs reference"

    print("KERNEL_OK")
</pallas_src>

<mosaic_0001>
module attributes {stable_mosaic.version = 11 : i64} {
  func.func @conv1x1_dw_sigmoid_kernel(%arg0: memref<4x1xf32, #tpu.memory_space<vmem>>, %arg1: memref<4x1xf32, #tpu.memory_space<vmem>>, %arg2: memref<4x256xf32, #tpu.memory_space<vmem>>, %arg3: memref<4x256xf32, #tpu.memory_space<vmem>>) attributes {dimension_semantics = [], scalar_prefetch = 0 : i64, scratch_operands = 0 : i64, tpu.core_type = #tpu.core_type<tc>} {
    %c0 = arith.constant 0 : index
    %c0_0 = arith.constant 0 : index
    %0 = vector.load %arg2[%c0, %c0_0] : memref<4x256xf32, #tpu.memory_space<vmem>>, vector<4x256xf32>
    %c0_1 = arith.constant 0 : index
    %c0_2 = arith.constant 0 : index
    %1 = vector.load %arg0[%c0_1, %c0_2] : memref<4x1xf32, #tpu.memory_space<vmem>>, vector<4x1xf32>
    %2 = vector.broadcast %1 : vector<4x1xf32> to vector<4x256xf32>
    %3 = arith.mulf %0, %2 : vector<4x256xf32>
    %c0_3 = arith.constant 0 : index
    %c0_4 = arith.constant 0 : index
    %4 = vector.load %arg1[%c0_3, %c0_4] : memref<4x1xf32, #tpu.memory_space<vmem>>, vector<4x1xf32>
    %5 = vector.broadcast %4 : vector<4x1xf32> to vector<4x256xf32>
    %6 = arith.addf %3, %5 : vector<4x256xf32>
    %cst = arith.constant 0.000000e+00 : f32
    %7 = vector.broadcast %cst : f32 to vector<4x256xf32>
    %8 = arith.subf %7, %6 : vector<4x256xf32>
    %9 = math.exp %8 : vector<4x256xf32>
    %cst_5 = arith.constant 1.000000e+00 : f32
    %10 = vector.broadcast %cst_5 : f32 to vector<4x256xf32>
    %11 = arith.addf %10, %9 : vector<4x256xf32>
    %12 = tpu.reciprocal %11 {approx = true} : vector<4x256xf32> -> vector<4x256xf32>
    %c0_6 = arith.constant 0 : index
    %c0_7 = arith.constant 0 : index
    %13 = vector.load %arg3[%c0_6, %c0_7] : memref<4x256xf32, #tpu.memory_space<vmem>>, vector<4x256xf32>
    tpu.vector_store %arg3[%c0_6, %c0_7], %12 {strides = array<i32>} : memref<4x256xf32, #tpu.memory_space<vmem>>, vector<4x256xf32>,
    return
  }
}

</mosaic_0001>

<llo_original>
// kernel: tpu_custom_call.1
$region0: #{tpu_custom_call.1}
  #allocation0 [shape = 'u32[]', space=smem, size = 0x4, offset = 0x4, fixed_abs, tag = 'smem constant byte address 0x4 - core index']
  #allocation1 [shape = 'u32[144,128]{1,0:T(1,128)}', space=vmem, size = 0x12000, scoped, tag = 'internal scratch']
  %s0 = inlined_call_operand.vmem [shape: f32[4,1], index: 0, kind: input, shape index: {}]
  %s1 = inlined_call_operand.vmem [shape: f32[4,1], index: 1, kind: input, shape index: {}]
  %s2 = inlined_call_operand.vmem [shape: f32[4,256], index: 2, kind: input, shape index: {}]
  %s3 = inlined_call_operand.hbm [shape: f32[4,256], index: 3, kind: output, shape index: {}]
  %s4 = sld [smem:[#allocation0]]
  $region22: #{tpu_custom_call.1} parent=0
    _
  %s6 = ssub.s32 1, %s4
  %s7 = scalar_select 0, %s6, %s4
  $region1: #{tpu_custom_call.1} parent=0
    #allocation2 [shape = 'u8[4096]{0}', space=vmem, size = 0x1000, scoped, tag = 'output window, operand 0, single buffered']
    #allocation3 [shape = 's32[1]{0}', space=sflag, size = 0x4, scoped, tag = 'scoped memory for tpu_custom_call.1']
    %8 = vsyncpa [#allocation3], 0
    // Predicated region
    $region2: #{tpu_custom_call.1} parent=1 // pred_check
      _
    $region3: #{tpu_custom_call.1} parent=1 // pred_check_branch
      %10 = sbr.rel (0) target = $region5
    $region4: #{tpu_custom_call.1} parent=1 // pred_region
      _
    $region5: #{tpu_custom_call.1} parent=1 // pred_fallthru
      _
    // Predicated region
    $region6: #{tpu_custom_call.1} parent=1 // pred_check
      _
    $region7: #{tpu_custom_call.1} parent=1 // pred_check_branch
      %12 = sbr.rel (0) target = $region9
    $region8: #{tpu_custom_call.1} parent=1 // pred_region
      _
    $region9: #{tpu_custom_call.1} parent=1 // pred_fallthru
      _
    // Predicated region
    $region10: #{tpu_custom_call.1} parent=1 // pred_check
      _
    $region11: #{tpu_custom_call.1} parent=1 // pred_check_branch
      %14 = sbr.rel (0) target = $region13
    $region12: #{tpu_custom_call.1} parent=1 // pred_region
      _
    $region13: #{tpu_custom_call.1} parent=1 // pred_fallthru
      _
    %v15 = vld [vmem:[%s2] sm:$0xff]
    %v16 = vld [vmem:[%s0] sm:$0xf]
    %18 = vset.pattern.permute.xlu0 0
    %19 = vperm.xlu0 %18, %v16
    %v20 = vpop.permute.xlu0 %19
    %v22 = vunpack.c.l.s4 839922192
    %v23 = vunpack.c.0.s8 %v22
    %v24 = vlaneseq
    %v25 = vshrl.u32 %v24, 7
    %v26 = vsub.s32 %v23, %v25
    %v27 = vrot.slane %v20, %v26
    %v29 = vmul.f32 %v15, %v27
    %v30 = vld [vmem:[%s1] sm:$0xf]
    %32 = vset.pattern.permute.xlu0 0
    %33 = vperm.xlu0 %32, %v30
    %v34 = vpop.permute.xlu0 %33
    %v36 = vunpack.c.l.s4 839922192
    %v37 = vunpack.c.0.s8 %v36
    %v38 = vlaneseq
    %v39 = vshrl.u32 %v38, 7
    %v40 = vsub.s32 %v37, %v39
    %v41 = vrot.slane %v34, %v40
    %v43 = vadd.f32 %v29, %v41
    %v44 = vsub.f32 0.0, %v43
    %v45 = vmul.f32 %v44, 1.442695
    %v46 = vpow.pop %v45
    %v47 = vadd.f32 %v46, 1.0
    %v48 = vrcp.pop %v47
    %49 = vst [vmem:[#allocation2] sm:$0xff] %v48
    // Predicated region
    $region14: #{tpu_custom_call.1} parent=1 // pred_check
      _
    $region15: #{tpu_custom_call.1} parent=1 // pred_check_branch
      %51 = sbr.rel (0) target = $region17
    $region16: #{tpu_custom_call.1} parent=1 // pred_region
      %s53 = ssub.s32 128, 128
      %54 = vsyncadd [#allocation3], %s53
      %s56 = sshll.u32 [#allocation2], 4
      %s57 = int_to_ptr.vmem [resolvable:$true] %s56
      %59 = dma.vmem_to_hbm [thread:$0]  %s57, 128, %s3, [#allocation3]
    $region17: #{tpu_custom_call.1} parent=1 // pred_fallthru
      _
    // Predicated region
    $region18: #{tpu_custom_call.1} parent=1 // pred_check
      _
    $region19: #{tpu_custom_call.1} parent=1 // pred_check_branch
      %61 = sbr.rel (0) target = $region21
    $region20: #{tpu_custom_call.1} parent=1 // pred_region
      %62 = dma.done [#allocation3], 128
    $region21: #{tpu_custom_call.1} parent=1 // pred_fallthru
      _
    %63 = vsyncpa [#allocation3], 1

</llo_original>
